<compile_context>
chip_gen: v7x
topology: tpu7x:2x2x1
jax: 0.10.0
libtpu: 0.0.40
codegen_flags: <defaults>
</compile_context>

<pallas_src>
import functools
import math

import jax
import jax.numpy as jnp
from jax import lax
from jax.experimental import pallas as pl
from jax.experimental.pallas import tpu as pltpu


# --------------------------------------------------------------------------
# Kernel
# --------------------------------------------------------------------------
def _ffn_kernel(x_ref, w1_ref, b1_ref, w2_ref, b2_ref, o_ref, acc_ref, *,
                th, mxu_dtype):
    # x_ref:  (tm, E_pad)   token tile (native dtype)
    # w1_ref: (E_pad, th)   fc1 weight tile (transposed)
    # b1_ref: (1, H_pad)    fc1 bias, fully resident; sliced per H step
    # w2_ref: (th, E_pad)   fc2 weight tile (transposed)
    # b2_ref: (1, E_pad)    fc2 bias, resident
    # o_ref:  (tm, E_pad)
    # acc_ref:(tm, E_pad)   f32 accumulator, resident across the H grid axis
    h_idx = pl.program_id(1)
    n_h = pl.num_programs(1)

    @pl.when(h_idx == 0)
    def _init():
        # Fold the fc2 bias into the accumulator init (saves one (tm,E) add).
        acc_ref[...] = jnp.broadcast_to(
            b2_ref[...].astype(jnp.float32), acc_ref.shape)

    x = x_ref[...]
    w1 = w1_ref[...]
    if mxu_dtype is not None:
        x = x.astype(mxu_dtype)
        w1 = w1.astype(mxu_dtype)
    # fc1 partial: native/bf16 operands, f32 accumulation on the MXU.
    h = jnp.dot(x, w1, preferred_element_type=jnp.float32)

    # b1 is fully resident; take this step's th-wide chunk in-kernel.
    start = pl.multiple_of(h_idx * th, th)
    h = h + b1_ref[:, pl.ds(start, th)].astype(jnp.float32)

    # Exact GELU (erf-based) in f32 to match nn.GELU() default semantics.
    # TODO(synk): gate a tanh-approx (EUP) / bf16 GELU path by chip generation
    #             (v6e/v7x only; v5e has no bf16 VPU/EUP) if numerics allow.
    h = 0.5 * h * (1.0 + lax.erf(h * (1.0 / math.sqrt(2.0))))

    w2 = w2_ref[...]
    if mxu_dtype is not None:
        w2 = w2.astype(mxu_dtype)
        h2 = h.astype(mxu_dtype)
    else:
        h2 = h.astype(w2_ref.dtype)
    # fc2 partial contribution for this H chunk.
    partial = jnp.dot(h2, w2, preferred_element_type=jnp.float32)

    @pl.when(h_idx < n_h - 1)
    def _accumulate():
        acc_ref[...] += partial

    @pl.when(h_idx == n_h - 1)
    def _finalize():
        # Write output directly (acc + last partial): no extra acc RMW.
        o_ref[...] = (acc_ref[...] + partial).astype(o_ref.dtype)


# --------------------------------------------------------------------------
# Tile planning helpers
# --------------------------------------------------------------------------
def _round_up(v, m):
    return ((v + m - 1) // m) * m


def _choose_th(h_pad, target):
    """Largest multiple of 128 that divides h_pad and is <= target."""
    k = h_pad // 128
    best = 1
    for d in range(1, k + 1):
        if k % d == 0 and 128 * d <= target:
            best = d
    return 128 * best


def _device_plan():
    """Generation-aware tile targets + VMEM capacity."""
    kind = ""
    try:
        kind = (jax.devices()[0].device_kind or "").lower()
    except Exception:
        pass

    if "v7" in kind:
        plan = dict(tm=768, th=256, vmem=64 << 20, even_token_tiles=True)
    elif "v6" in kind:
        plan = dict(tm=768, th=1024, vmem=128 << 20, even_token_tiles=False)
    elif "v5e" in kind or "v5 lite" in kind or "v5lite" in kind:
        plan = dict(tm=256, th=2048, vmem=128 << 20, even_token_tiles=False)
    else:
        # Unknown generation: conservative (valid on 64 MiB parts).
        plan = dict(tm=512, th=512, vmem=64 << 20, even_token_tiles=False)

    try:
        plan["vmem"] = int(pltpu.get_tpu_info().vmem_capacity_bytes)
    except Exception:
        pass
    return plan


def _vmem_estimate(tm, th, e_pad, h_pad, isz_x, isz_w):
    est = 0
    est += 2 * tm * e_pad * isz_x            # x tile (double-buffered)
    est += 2 * tm * e_pad * isz_x            # out tile
    est += 2 * e_pad * th * isz_w            # W1 tile
    est += 2 * th * e_pad * isz_w            # W2 tile
    est += h_pad * isz_w + 2 * e_pad * isz_w  # b1 (resident) + b2
    est += tm * e_pad * 4                    # f32 accumulator scratch
    est += tm * th * 4 + tm * th * max(isz_w, isz_x)  # fc1 intermediate + cast
    est += 4 << 20                           # compiler-internal scratch margin
    return est


# --------------------------------------------------------------------------
# Wrapper
# --------------------------------------------------------------------------
def prepare_ffn_params(w1, b1, w2, b2):
    """One-time weight prep (transpose + zero-pad). Cache and reuse across calls.

    PyTorch layout: w1 (H, E), b1 (H,), w2 (E, H), b2 (E,).
    """
    H, E = w1.shape
    E_pad = _round_up(E, 128)
    H_pad = _round_up(H, 128)
    w1p = jnp.zeros((E_pad, H_pad), w1.dtype).at[:E, :H].set(w1.T)
    b1p = jnp.zeros((1, H_pad), b1.dtype).at[0, :H].set(b1)
    w2p = jnp.zeros((H_pad, E_pad), w2.dtype).at[:H, :E].set(w2.T)
    b2p = jnp.zeros((1, E_pad), b2.dtype).at[0, :E].set(b2)
    return dict(w1=w1p, b1=b1p, w2=w2p, b2=b2p,
                E=E, H=H, E_pad=E_pad, H_pad=H_pad)


def feed_forward_prepared(x, params, *, tm=None, th=None, mxu_dtype=None):
    """y = fc2(gelu(fc1(x))) using pre-padded/transposed weights."""
    E, H = params["E"], params["H"]
    E_pad, H_pad = params["E_pad"], params["H_pad"]

    orig_shape = x.shape
    xm = x.reshape(-1, E)
    M = xm.shape[0]
    dt = x.dtype

    plan = _device_plan()
    tm_target = tm if tm is not None else plan["tm"]
    th_target = th if th is not None else plan["th"]
    vmem_cap = plan["vmem"]

    # ---- tile sizing: lane-dense (128), sublane-aligned (8) ----------------
    th_eff = _choose_th(H_pad, max(128, th_target))
    tm_eff = max(8, min(_round_up(tm_target, 8), _round_up(M, 8)))
    # v7x megacore: prefer >=2 token tiles so both TensorCores get work.
    if plan["even_token_tiles"] and M >= 16:
        if _round_up(M, tm_eff) // tm_eff < 2:
            tm_eff = max(8, _round_up((M + 1) // 2, 8))

    isz_x = jnp.dtype(dt).itemsize
    isz_w = jnp.dtype(params["w1"].dtype).itemsize

    # Shrink th (then tm) until the plan fits the chip's VMEM with headroom.
    while (_vmem_estimate(tm_eff, th_eff, E_pad, H_pad, isz_x, isz_w)
           > int(0.85 * vmem_cap)) and th_eff > 128:
        th_eff = _choose_th(H_pad, th_eff // 2)
    while (_vmem_estimate(tm_eff, th_eff, E_pad, H_pad, isz_x, isz_w)
           > int(0.85 * vmem_cap)) and tm_eff > 128:
        tm_eff = max(128, _round_up(tm_eff // 2, 8))

    M_pad = _round_up(M, tm_eff)
    grid = (M_pad // tm_eff, H_pad // th_eff)

    # ---- activation padding: skip the copy when already aligned ------------
    needs_pad = (M_pad != M) or (E_pad != E)
    if needs_pad:
        xp = jnp.zeros((M_pad, E_pad), dt).at[:M, :E].set(xm)
    else:
        xp = xm

    vmem_est = _vmem_estimate(tm_eff, th_eff, E_pad, H_pad, isz_x, isz_w)
    vmem_limit = int(min(vmem_cap, max(32 << 20, int(1.25 * vmem_est))))

    n_token_tiles = grid[0]
    cost = pl.CostEstimate(
        flops=4 * M_pad * E_pad * H_pad,
        transcendentals=M_pad * H_pad,
        bytes_accessed=(2 * M_pad * E_pad * isz_x                      # x + out
                        + 2 * E_pad * H_pad * isz_w * n_token_tiles),  # weights
    )

    kernel = functools.partial(_ffn_kernel, th=th_eff, mxu_dtype=mxu_dtype)

    out = pl.pallas_call(
        kernel,
        out_shape=jax.ShapeDtypeStruct((M_pad, E_pad), dt),
        grid_spec=pltpu.PrefetchScalarGridSpec(
            num_scalar_prefetch=0,
            grid=grid,
            in_specs=[
                pl.BlockSpec((tm_eff, E_pad), lambda i, h: (i, 0)),   # x tile
                pl.BlockSpec((E_pad, th_eff), lambda i, h: (0, h)),   # W1 tile
                pl.BlockSpec((1, H_pad),      lambda i, h: (0, 0)),   # b1 (resident)
                pl.BlockSpec((th_eff, E_pad), lambda i, h: (h, 0)),   # W2 tile
                pl.BlockSpec((1, E_pad),      lambda i, h: (0, 0)),   # b2 (resident)
            ],
            out_specs=pl.BlockSpec((tm_eff, E_pad), lambda i, h: (i, 0)),
            scratch_shapes=[pltpu.VMEM((tm_eff, E_pad), jnp.float32)],
        ),
        compiler_params=pltpu.CompilerParams(
            dimension_semantics=("parallel", "arbitrary"),
            vmem_limit_bytes=vmem_limit),
        cost_estimate=cost,
    )(xp, params["w1"], params["b1"], params["w2"], params["b2"])

    if needs_pad:
        out = out[:M, :E]
    return out.reshape(orig_shape)


def feed_forward(x, w1, b1, w2, b2, **kwargs):
    """One-shot convenience wrapper (prep not cached). Prefer prepare_ffn_params
    + feed_forward_prepared when calling repeatedly with the same weights."""
    return feed_forward_prepared(x, prepare_ffn_params(w1, b1, w2, b2), **kwargs)


# --------------------------------------------------------------------------
# Reference + test harness
# --------------------------------------------------------------------------
def feed_forward_ref(x, w1, b1, w2, b2):
    """Pure-JAX reference matching PyTorch semantics (erf GELU)."""
    h = jnp.einsum("...e,he->...h", x, w1) + b1
    h = 0.5 * h * (1.0 + lax.erf(h / jnp.sqrt(2.0).astype(h.dtype)))
    return jnp.einsum("...h,eh->...e", h, w2) + b2


def _make_params(key, embed, hidden, dtype=jnp.float32):
    k1, kb1, k2, kb2 = jax.random.split(key, 4)
    bound1 = 1.0 / math.sqrt(embed)
    w1 = jax.random.uniform(k1, (hidden, embed), dtype, -bound1, bound1)
    b1 = jax.random.uniform(kb1, (hidden,), dtype, -bound1, bound1)
    bound2 = 1.0 / math.sqrt(hidden)
    w2 = jax.random.uniform(k2, (embed, hidden), dtype, -bound2, bound2)
    b2 = jax.random.uniform(kb2, (hidden,), dtype, -bound2, bound2) \
        if False else jax.random.uniform(kb2, (embed,), dtype, -bound2, bound2)
    return w1, b1, w2, b2


if __name__ == "__main__":
    key = jax.random.PRNGKey(0)
    k_a, k_b, kp_a, kp_b = jax.random.split(key, 4)

    # Case A: toy shape from the module spec; weight prep hoisted & reused.
    batch, seq, embed, hidden = 2, 8, 32, 64
    x_a = jax.random.normal(k_a, (batch, seq, embed), dtype=jnp.float32)
    w1_a, b1_a, w2_a, b2_a = _make_params(kp_a, embed, hidden)
    prep_a = prepare_ffn_params(w1_a, b1_a, w2_a, b2_a)       # cached weight prep
    y_a = jax.block_until_ready(feed_forward_prepared(x_a, prep_a))
    _ = jax.block_until_ready(feed_forward_prepared(x_a, prep_a))  # reuse prep
    y_a_ref = feed_forward_ref(x_a, w1_a, b1_a, w2_a, b2_a)
    assert y_a.shape == x_a.shape
    assert jnp.allclose(y_a, y_a_ref, atol=1e-4, rtol=1e-4), "mismatch (case A)"

    # Case B: ragged shapes exercising padding + multi-tile grid + H accumulation.
    batch, seq, embed, hidden = 2, 56, 96, 272
    x_b = jax.random.normal(k_b, (batch, seq, embed), dtype=jnp.float32)
    w1_b, b1_b, w2_b, b2_b = _make_params(kp_b, embed, hidden)
    y_b = jax.block_until_ready(
        feed_forward(x_b, w1_b, b1_b, w2_b, b2_b, tm=64, th=128))
    y_b_ref = feed_forward_ref(x_b, w1_b, b1_b, w2_b, b2_b)
    assert y_b.shape == x_b.shape
    assert jnp.allclose(y_b, y_b_ref, atol=1e-4, rtol=1e-4), "mismatch (case B)"

    print("KERNEL_OK")
</pallas_src>

<mosaic_0001>
module attributes {stable_mosaic.version = 11 : i64} {
  func.func @_ffn_kernel(%arg0: i32, %arg1: i32, %arg2: memref<16x128xf32, #tpu.memory_space<vmem>>, %arg3: memref<128x128xf32, #tpu.memory_space<vmem>>, %arg4: memref<1x128xf32, #tpu.memory_space<vmem>>, %arg5: memref<128x128xf32, #tpu.memory_space<vmem>>, %arg6: memref<1x128xf32, #tpu.memory_space<vmem>>, %arg7: memref<16x128xf32, #tpu.memory_space<vmem>>, %arg8: memref<16x128xf32, #tpu.memory_space<vmem>>) attributes {dimension_semantics = [#tpu.dimension_semantics<parallel>, #tpu.dimension_semantics<arbitrary>], iteration_bounds = array<i64: 1, 1>, scalar_prefetch = 0 : i64, scratch_operands = 1 : i64, tpu.core_type = #tpu.core_type<tc>, window_params = [{transform_indices = @transform_0, window_bounds = array<i64: 16, 128>}, {transform_indices = @transform_1, window_bounds = array<i64: 128, 128>}, {pipeline_mode = #tpu.pipeline_mode<synchronous>, transform_indices = @transform_2, window_bounds = array<i64: 1, 128>}, {transform_indices = @transform_3, window_bounds = array<i64: 128, 128>}, {pipeline_mode = #tpu.pipeline_mode<synchronous>, transform_indices = @transform_4, window_bounds = array<i64: 1, 128>}, {transform_indices = @transform_5, window_bounds = array<i64: 16, 128>}]} {
    %c0_i32 = arith.constant 0 : i32
    %0 = arith.cmpi eq, %arg1, %c0_i32 : i32
    %1 = arith.extui %0 : i1 to i32
    %c0_i32_0 = arith.constant 0 : i32
    %2 = arith.cmpi ne, %1, %c0_i32_0 : i32
    scf.if %2 {
      %c0_15 = arith.constant 0 : index
      %c0_16 = arith.constant 0 : index
      %28 = vector.load %arg6[%c0_15, %c0_16] : memref<1x128xf32, #tpu.memory_space<vmem>>, vector<1x128xf32>
      %29 = vector.shape_cast %28 : vector<1x128xf32> to vector<1x128xf32>
      %30 = vector.broadcast %29 : vector<1x128xf32> to vector<16x128xf32>
      %c0_17 = arith.constant 0 : index
      %c0_18 = arith.constant 0 : index
      %31 = vector.load %arg8[%c0_17, %c0_18] : memref<16x128xf32, #tpu.memory_space<vmem>>, vector<16x128xf32>
      tpu.vector_store %arg8[%c0_17, %c0_18], %30 {strides = array<i32>} : memref<16x128xf32, #tpu.memory_space<vmem>>, vector<16x128xf32>,
    } else {
    }
    %c0 = arith.constant 0 : index
    %c0_1 = arith.constant 0 : index
    %3 = vector.load %arg2[%c0, %c0_1] : memref<16x128xf32, #tpu.memory_space<vmem>>, vector<16x128xf32>
    %c0_2 = arith.constant 0 : index
    %c0_3 = arith.constant 0 : index
    %4 = vector.load %arg3[%c0_2, %c0_3] : memref<128x128xf32, #tpu.memory_space<vmem>>, vector<128x128xf32>
    %cst = arith.constant dense<0.000000e+00> : vector<16x128xf32>
    %5 = tpu.matmul %3, %4, %cst {dimension_numbers = #tpu.dot_dimension_numbers<[1], [0], [0], [1], [0, 0, 1, 1], [], []>} : vector<16x128xf32>, vector<128x128xf32>, vector<16x128xf32> -> vector<16x128xf32>
    %c128_i32 = arith.constant 128 : i32
    %6 = arith.muli %arg1, %c128_i32 : i32
    %7 = tpu.assume_multiple %6, 128 : i32
    %c0_4 = arith.constant 0 : index
    %8 = arith.index_cast %7 : i32 to index
    %9 = vector.load %arg4[%c0_4, %8] : memref<1x128xf32, #tpu.memory_space<vmem>>, vector<1x128xf32>
    %10 = vector.broadcast %9 : vector<1x128xf32> to vector<16x128xf32>
    %11 = arith.addf %5, %10 : vector<16x128xf32>
    %cst_5 = arith.constant 5.000000e-01 : f32
    %12 = vector.broadcast %cst_5 : f32 to vector<16x128xf32>
    %13 = arith.mulf %12, %11 : vector<16x128xf32>
    %cst_6 = arith.constant 0.707106769 : f32
    %14 = vector.broadcast %cst_6 : f32 to vector<16x128xf32>
    %15 = arith.mulf %11, %14 : vector<16x128xf32>
    %16 = math.erf %15 : vector<16x128xf32>
    %cst_7 = arith.constant 1.000000e+00 : f32
    %17 = vector.broadcast %cst_7 : f32 to vector<16x128xf32>
    %18 = arith.addf %17, %16 : vector<16x128xf32>
    %19 = arith.mulf %13, %18 : vector<16x128xf32>
    %c0_8 = arith.constant 0 : index
    %c0_9 = arith.constant 0 : index
    %20 = vector.load %arg5[%c0_8, %c0_9] : memref<128x128xf32, #tpu.memory_space<vmem>>, vector<128x128xf32>
    %cst_10 = arith.constant dense<0.000000e+00> : vector<16x128xf32>
    %21 = tpu.matmul %19, %20, %cst_10 {dimension_numbers = #tpu.dot_dimension_numbers<[1], [0], [0], [1], [0, 0, 1, 1], [], []>} : vector<16x128xf32>, vector<128x128xf32>, vector<16x128xf32> -> vector<16x128xf32>
    %c0_i32_11 = arith.constant 0 : i32
    %22 = arith.cmpi slt, %arg1, %c0_i32_11 : i32
    %23 = arith.extui %22 : i1 to i32
    %c0_i32_12 = arith.constant 0 : i32
    %24 = arith.cmpi ne, %23, %c0_i32_12 : i32
    scf.if %24 {
      %c0_15 = arith.constant 0 : index
      %c0_16 = arith.constant 0 : index
      %28 = vector.load %arg8[%c0_15, %c0_16] : memref<16x128xf32, #tpu.memory_space<vmem>>, vector<16x128xf32>
      %29 = arith.addf %28, %21 : vector<16x128xf32>
      %c0_17 = arith.constant 0 : index
      %c0_18 = arith.constant 0 : index
      %30 = vector.load %arg8[%c0_17, %c0_18] : memref<16x128xf32, #tpu.memory_space<vmem>>, vector<16x128xf32>
      tpu.vector_store %arg8[%c0_17, %c0_18], %29 {strides = array<i32>} : memref<16x128xf32, #tpu.memory_space<vmem>>, vector<16x128xf32>,
    } else {
    }
    %c0_i32_13 = arith.constant 0 : i32
    %25 = arith.cmpi eq, %arg1, %c0_i32_13 : i32
    %26 = arith.extui %25 : i1 to i32
    %c0_i32_14 = arith.constant 0 : i32
    %27 = arith.cmpi ne, %26, %c0_i32_14 : i32
    scf.if %27 {
      %c0_15 = arith.constant 0 : index
      %c0_16 = arith.constant 0 : index
      %28 = vector.load %arg8[%c0_15, %c0_16] : memref<16x128xf32, #tpu.memory_space<vmem>>, vector<16x128xf32>
      %29 = arith.addf %28, %21 : vector<16x128xf32>
      %c0_17 = arith.constant 0 : index
      %c0_18 = arith.constant 0 : index
      %30 = vector.load %arg7[%c0_17, %c0_18] : memref<16x128xf32, #tpu.memory_space<vmem>>, vector<16x128xf32>
      tpu.vector_store %arg7[%c0_17, %c0_18], %29 {strides = array<i32>} : memref<16x128xf32, #tpu.memory_space<vmem>>, vector<16x128xf32>,
    } else {
    }
    return
  }
  func.func @transform_0(%arg0: i32, %arg1: i32) -> (i32, i32) {
    %c0_i32 = arith.constant 0 : i32
    %c0_i32_0 = arith.constant 0 : i32
    return %arg0, %c0_i32 : i32, i32
  }
  func.func @transform_1(%arg0: i32, %arg1: i32) -> (i32, i32) {
    %c0_i32 = arith.constant 0 : i32
    %c0_i32_0 = arith.constant 0 : i32
    return %c0_i32, %arg1 : i32, i32
  }
  func.func @transform_2(%arg0: i32, %arg1: i32) -> (i32, i32) {
    %c0_i32 = arith.constant 0 : i32
    %c0_i32_0 = arith.constant 0 : i32
    %c0_i32_1 = arith.constant 0 : i32
    return %c0_i32, %c0_i32_0 : i32, i32
  }
  func.func @transform_3(%arg0: i32, %arg1: i32) -> (i32, i32) {
    %c0_i32 = arith.constant 0 : i32
    %c0_i32_0 = arith.constant 0 : i32
    return %arg1, %c0_i32 : i32, i32
  }
  func.func @transform_4(%arg0: i32, %arg1: i32) -> (i32, i32) {
    %c0_i32 = arith.constant 0 : i32
    %c0_i32_0 = arith.constant 0 : i32
    %c0_i32_1 = arith.constant 0 : i32
    return %c0_i32, %c0_i32_0 : i32, i32
  }
  func.func @transform_5(%arg0: i32, %arg1: i32) -> (i32, i32) {
    %c0_i32 = arith.constant 0 : i32
    %c0_i32_0 = arith.constant 0 : i32
    return %arg0, %c0_i32 : i32, i32
  }
}

</mosaic_0001>

<llo_original>
// kernel: tpu_custom_call.1
$region0: #{tpu_custom_call.1}
  #allocation0 [shape = 'u32[]', space=smem, size = 0x4, offset = 0x4, fixed_abs, tag = 'smem constant byte address 0x4 - core index']
  #allocation1 [shape = 'u32[144,128]{1,0:T(1,128)}', space=vmem, size = 0x12000, scoped, tag = 'internal scratch']
  #allocation2 [shape = 'f32[16,128]{1,0:T(8,128)}', space=vmem, size = 0x2000, scoped, tag = 'scratch operand']
  %s0 = inlined_call_operand.hbm [shape: f32[16,128], index: 0, kind: input, shape index: {}]
  %s1 = inlined_call_operand.hbm [shape: f32[128,128], index: 1, kind: input, shape index: {}]
  %s2 = inlined_call_operand.vmem [shape: f32[1,128], index: 2, kind: input, shape index: {}]
  %s3 = inlined_call_operand.hbm [shape: f32[128,128], index: 3, kind: input, shape index: {}]
  %s4 = inlined_call_operand.vmem [shape: f32[1,128], index: 4, kind: input, shape index: {}]
  %s5 = inlined_call_operand.hbm [shape: f32[16,128], index: 5, kind: output, shape index: {}]
  %s6 = sld [smem:[#allocation0]]
  $region54: #{tpu_custom_call.1} parent=0
    _
  %s8 = ssub.s32 1, %s6
  %s9 = scalar_select 0, %s8, %s6
  $region1: #{tpu_custom_call.1} parent=0
    #allocation3 [shape = 'u8[8192]{0}', space=vmem, size = 0x2000, scoped, tag = 'input window, operand 0, single buffered']
    #allocation4 [shape = 's32[1]{0}', space=sflag, size = 0x4, scoped, tag = 'scoped memory for tpu_custom_call.1']
    #allocation5 [shape = 's32[1]{0}', space=sflag, size = 0x4, scoped, tag = 'scoped memory for tpu_custom_call.1']
    #allocation6 [shape = 'u8[65536]{0}', space=vmem, size = 0x10000, scoped, tag = 'input window, operand 1, single buffered']
    #allocation7 [shape = 's32[1]{0}', space=sflag, size = 0x4, scoped, tag = 'scoped memory for tpu_custom_call.1']
    #allocation8 [shape = 'u8[65536]{0}', space=vmem, size = 0x10000, scoped, tag = 'input window, operand 3, single buffered']
    #allocation9 [shape = 'u8[8192]{0}', space=vmem, size = 0x2000, scoped, tag = 'output window, operand 0, single buffered']
    %10 = vsyncpa [#allocation4], 0
    %11 = vsyncpa [#allocation7], 0
    %12 = vsyncpa [#allocation5], 0
    // Predicated region
    $region2: #{tpu_custom_call.1} parent=1 // pred_check
      _
    $region3: #{tpu_custom_call.1} parent=1 // pred_check_branch
      %14 = sbr.rel (0) target = $region5
    $region4: #{tpu_custom_call.1} parent=1 // pred_region
      %s16 = ssub.s32 256, 256
      %17 = vsyncadd [#allocation4], %s16
      %s18 = sshll.u32 [#allocation3], 4
      %s19 = int_to_ptr.vmem [resolvable:$true] %s18
      %24 = dma.hbm_to_vmem [thread:$0]  %s0, 256, %s19, [#allocation4], 128, 128, 8
    $region5: #{tpu_custom_call.1} parent=1 // pred_fallthru
      _
    // Predicated region
    $region6: #{tpu_custom_call.1} parent=1 // pred_check
      _
    $region7: #{tpu_custom_call.1} parent=1 // pred_check_branch
      %26 = sbr.rel (0) target = $region9
    $region8: #{tpu_custom_call.1} parent=1 // pred_region
      %s28 = ssub.s32 2048, 2048
      %29 = vsyncadd [#allocation7], %s28
      %s30 = sshll.u32 [#allocation6], 4
      %s31 = int_to_ptr.vmem [resolvable:$true] %s30
      %36 = dma.hbm_to_vmem [thread:$0]  %s1, 2048, %s31, [#allocation7], 128, 128, 8
    $region9: #{tpu_custom_call.1} parent=1 // pred_fallthru
      _
    // Predicated region
    $region10: #{tpu_custom_call.1} parent=1 // pred_check
      _
    $region11: #{tpu_custom_call.1} parent=1 // pred_check_branch
      %38 = sbr.rel (0) target = $region13
    $region12: #{tpu_custom_call.1} parent=1 // pred_region
      _
    $region13: #{tpu_custom_call.1} parent=1 // pred_fallthru
      _
    // Predicated region
    $region14: #{tpu_custom_call.1} parent=1 // pred_check
      _
    $region15: #{tpu_custom_call.1} parent=1 // pred_check_branch
      %40 = sbr.rel (0) target = $region17
    $region16: #{tpu_custom_call.1} parent=1 // pred_region
      %s42 = ssub.s32 2048, 2048
      %43 = vsyncadd [#allocation7], %s42
      %s44 = sshll.u32 [#allocation8], 4
      %s45 = int_to_ptr.vmem [resolvable:$true] %s44
      %50 = dma.hbm_to_vmem [thread:$0]  %s3, 2048, %s45, [#allocation7], 128, 128, 8
    $region17: #{tpu_custom_call.1} parent=1 // pred_fallthru
      _
    // Predicated region
    $region18: #{tpu_custom_call.1} parent=1 // pred_check
      _
    $region19: #{tpu_custom_call.1} parent=1 // pred_check_branch
      %52 = sbr.rel (0) target = $region21
    $region20: #{tpu_custom_call.1} parent=1 // pred_region
      _
    $region21: #{tpu_custom_call.1} parent=1 // pred_fallthru
      _
    // Predicated region
    $region22: #{tpu_custom_call.1} parent=1 // pred_check
      _
    $region23: #{tpu_custom_call.1} parent=1 // pred_check_branch
      %54 = sbr.rel (0) target = $region25
    $region24: #{tpu_custom_call.1} parent=1 // pred_region
      %55 = dma.done [#allocation4], 256
    $region25: #{tpu_custom_call.1} parent=1 // pred_fallthru
      _
    // Predicated region
    $region26: #{tpu_custom_call.1} parent=1 // pred_check
      _
    $region27: #{tpu_custom_call.1} parent=1 // pred_check_branch
      %57 = sbr.rel (0) target = $region29
    $region28: #{tpu_custom_call.1} parent=1 // pred_region
      %58 = dma.done [#allocation7], 2048
    $region29: #{tpu_custom_call.1} parent=1 // pred_fallthru
      _
    // Predicated region
    $region30: #{tpu_custom_call.1} parent=1 // pred_check
      _
    $region31: #{tpu_custom_call.1} parent=1 // pred_check_branch
      %60 = sbr.rel (0) target = $region33
    $region32: #{tpu_custom_call.1} parent=1 // pred_region
      %61 = dma.done [#allocation7], 2048
    $region33: #{tpu_custom_call.1} parent=1 // pred_fallthru
      _
    %p62 = scmp.eq.s32.totalorder 0, 0
    // Predicated region
    $region34: #{tpu_custom_call.1} parent=1 // pred_check
      %p63 = pneg %p62
    $region35: #{tpu_custom_call.1} parent=1 // pred_check_branch
      %65 = sbr.rel (%p63) target = $region37
    $region36: #{tpu_custom_call.1} parent=1 // pred_region
      %v66 = vld [vmem:[%s4] sm:$0x1]
      %v68 = vlaneseq
      %v69 = vshrl.u32 %v68, 7
      %v70 = vsub.s32 0, %v69
      %v71 = vrot.slane %v66, %v70
      %73 = vst [vmem:[#allocation2] sm:$0xff] %v71
      %74 = vst [vmem:[#allocation2 + $0x8] sm:$0xff] %v71
    $region37: #{tpu_custom_call.1} parent=1 // pred_fallthru
      _
    %v75 = vld [vmem:[#allocation3] sm:$0xff]
    %v76 = vld [vmem:[#allocation3 + $0x8] sm:$0xff]
    %v77 = vld [vmem:[#allocation6] sm:$0xff]
    %v78 = vld [vmem:[#allocation6 + $0x8] sm:$0xff]
    %v79 = vld [vmem:[#allocation6 + $0x10] sm:$0xff]
    %v80 = vld [vmem:[#allocation6 + $0x18] sm:$0xff]
    %v81 = vld [vmem:[#allocation6 + $0x20] sm:$0xff]
    %v82 = vld [vmem:[#allocation6 + $0x28] sm:$0xff]
    %v83 = vld [vmem:[#allocation6 + $0x30] sm:$0xff]
    %v84 = vld [vmem:[#allocation6 + $0x38] sm:$0xff]
    %v85 = vld [vmem:[#allocation6 + $0x40] sm:$0xff]
    %v86 = vld [vmem:[#allocation6 + $0x48] sm:$0xff]
    %v87 = vld [vmem:[#allocation6 + $0x50] sm:$0xff]
    %v88 = vld [vmem:[#allocation6 + $0x58] sm:$0xff]
    %v89 = vld [vmem:[#allocation6 + $0x60] sm:$0xff]
    %v90 = vld [vmem:[#allocation6 + $0x68] sm:$0xff]
    %v91 = vld [vmem:[#allocation6 + $0x70] sm:$0xff]
    %v92 = vld [vmem:[#allocation6 + $0x78] sm:$0xff]
    %s93 = smul.u32 0, 128
    %s94 = sshra.s32 %s93, 7
    %s95 = sand.u32 %s93, 127
    %s96 = scalar_lea.vmem %s2, %s94
    %v97 = vld [vmem:[%s96] sm:$0x1]
    %v99 = vlaneseq
    %v100 = vshrl.u32 %v99, 7
    %v101 = vsub.s32 0, %v100
    %v102 = vrot.slane %v97, %v101
    %104 = vmatprep.subr.mxu0 0.0
    %105 = vmatpush1.msra.mxu0 %v77
    %106 = vmatprep.subr.mxu0 0.0
    %107 = vmatpush1.msra.mxu0 %v78
    %108 = vmatprep.subr.mxu0 0.0
    %109 = vmatpush1.msra.mxu0 %v79
    %110 = vmatprep.subr.mxu0 0.0
    %111 = vmatpush1.msra.mxu0 %v80
    %112 = vmatprep.subr.mxu0 0.0
    %113 = vmatpush1.msra.mxu0 %v81
    %114 = vmatprep.subr.mxu0 0.0
    %115 = vmatpush1.msra.mxu0 %v82
    %116 = vmatprep.subr.mxu0 0.0
    %117 = vmatpush1.msra.mxu0 %v83
    %118 = vmatprep.subr.mxu0 0.0
    %119 = vmatpush1.msra.mxu0 %v84
    %120 = vmatprep.subr.mxu0 0.0
    %121 = vmatpush1.msra.mxu0 %v85
    %122 = vmatprep.subr.mxu0 0.0
    %123 = vmatpush1.msra.mxu0 %v86
    %124 = vmatprep.subr.mxu0 0.0
    %125 = vmatpush1.msra.mxu0 %v87
    %126 = vmatprep.subr.mxu0 0.0
    %127 = vmatpush1.msra.mxu0 %v88
    %128 = vmatprep.subr.mxu0 0.0
    %129 = vmatpush1.msra.mxu0 %v89
    %130 = vmatprep.subr.mxu0 0.0
    %131 = vmatpush1.msra.mxu0 %v90
    %132 = vmatprep.subr.mxu0 0.0
    %133 = vmatpush1.msra.mxu0 %v91
    %134 = vmatprep.subr.mxu0 0.0
    %135 = vmatpush1.msra.mxu0 %v92
    %136 = vmatprep.subr.mxu0 0.0
    %137 = vmatpush1.msra.mxu0 0.0
    %138 = vmatprep.subr.mxu0 0.0
    %139 = vmatpush1.msra.mxu0 0.0
    %140 = vmatprep.subr.mxu0 0.0
    %141 = vmatpush1.msra.mxu0 0.0
    %142 = vmatprep.subr.mxu0 0.0
    %143 = vmatpush1.msra.mxu0 0.0
    %144 = vmatprep.subr.mxu0 0.0
    %145 = vmatpush1.msra.mxu0 0.0
    %146 = vmatprep.subr.mxu0 0.0
    %147 = vmatpush1.msra.mxu0 0.0
    %148 = vmatprep.subr.mxu0 0.0
    %149 = vmatpush1.msra.mxu0 0.0
    %150 = vmatprep.subr.mxu0 0.0
    %151 = vmatpush1.msra.mxu0 0.0
    %152 = vmatprep.subr.mxu0 0.0
    %153 = vmatpush1.msra.mxu0 0.0
    %154 = vmatprep.subr.mxu0 0.0
    %155 = vmatpush1.msra.mxu0 0.0
    %156 = vmatprep.subr.mxu0 0.0
    %157 = vmatpush1.msra.mxu0 0.0
    %158 = vmatprep.subr.mxu0 0.0
    %159 = vmatpush1.msra.mxu0 0.0
    %160 = vmatprep.subr.mxu0 0.0
    %161 = vmatpush1.msra.mxu0 0.0
    %162 = vmatprep.subr.mxu0 0.0
    %163 = vmatpush1.msra.mxu0 0.0
    %164 = vmatprep.subr.mxu0 0.0
    %165 = vmatpush1.msra.mxu0 0.0
    %166 = vmatprep.subr.mxu0 0.0
    %167 = vmatpush1.msra.mxu0 0.0
    %168 = vmatprep.mubr.f32.mxu0 0.0
    %169 = vmatmul.mubr.f32.gmra.mrb[0].mxu0 %v75
    %v170 = vpop.f32.mrb[0].mxu0
    %v171 = vadd.f32 %v102, %v170
    %v172 = vpop.f32.mrb[0].mxu0
    %173 = vmatprep.mubr.f32.mxu0 0.0
    %174 = vmatmul.mubr.f32.gmra.mrb[0].mxu0 %v76
    %v175 = vpop.f32.mrb[0].mxu0
    %v176 = vadd.f32 %v102, %v175
    %v177 = vpop.f32.mrb[0].mxu0
    %178 = vdwg.mxu0
    %v179 = vmul.f32 %v171, 0.5
    %v180 = vmul.f32 %v176, 0.5
    %v181 = vmul.f32 %v171, 0.70710677
    %v182 = vmul.f32 %v176, 0.70710677
    %v183 = verf.f32.pop %v181
    %v184 = verf.f32.pop %v182
    %v185 = vadd.f32 %v183, 1.0
    %v186 = vadd.f32 %v184, 1.0
    %v187 = vmul.f32 %v179, %v185
    %v188 = vmul.f32 %v180, %v186
    %v189 = vld [vmem:[#allocation8] sm:$0xff]
    %v190 = vld [vmem:[#allocation8 + $0x8] sm:$0xff]
    %v191 = vld [vmem:[#allocation8 + $0x10] sm:$0xff]
    %v192 = vld [vmem:[#allocation8 + $0x18] sm:$0xff]
    %v193 = vld [vmem:[#allocation8 + $0x20] sm:$0xff]
    %v194 = vld [vmem:[#allocation8 + $0x28] sm:$0xff]
    %v195 = vld [vmem:[#allocation8 + $0x30] sm:$0xff]
    %v196 = vld [vmem:[#allocation8 + $0x38] sm:$0xff]
    %v197 = vld [vmem:[#allocation8 + $0x40] sm:$0xff]
    %v198 = vld [vmem:[#allocation8 + $0x48] sm:$0xff]
    %v199 = vld [vmem:[#allocation8 + $0x50] sm:$0xff]
    %v200 = vld [vmem:[#allocation8 + $0x58] sm:$0xff]
    %v201 = vld [vmem:[#allocation8 + $0x60] sm:$0xff]
    %v202 = vld [vmem:[#allocation8 + $0x68] sm:$0xff]
    %v203 = vld [vmem:[#allocation8 + $0x70] sm:$0xff]
    %v204 = vld [vmem:[#allocation8 + $0x78] sm:$0xff]
    %205 = vmatprep.subr.mxu0 0.0
    %206 = vmatpush1.msra.mxu0 %v189
    %207 = vmatprep.subr.mxu0 0.0
    %208 = vmatpush1.msra.mxu0 %v190
    %209 = vmatprep.subr.mxu0 0.0
    %210 = vmatpush1.msra.mxu0 %v191
    %211 = vmatprep.subr.mxu0 0.0
    %212 = vmatpush1.msra.mxu0 %v192
    %213 = vmatprep.subr.mxu0 0.0
    %214 = vmatpush1.msra.mxu0 %v193
    %215 = vmatprep.subr.mxu0 0.0
    %216 = vmatpush1.msra.mxu0 %v194
    %217 = vmatprep.subr.mxu0 0.0
    %218 = vmatpush1.msra.mxu0 %v195
    %219 = vmatprep.subr.mxu0 0.0
    %220 = vmatpush1.msra.mxu0 %v196
    %221 = vmatprep.subr.mxu0 0.0
    %222 = vmatpush1.msra.mxu0 %v197
    %223 = vmatprep.subr.mxu0 0.0
    %224 = vmatpush1.msra.mxu0 %v198
    %225 = vmatprep.subr.mxu0 0.0
    %226 = vmatpush1.msra.mxu0 %v199
    %227 = vmatprep.subr.mxu0 0.0
    %228 = vmatpush1.msra.mxu0 %v200
    %229 = vmatprep.subr.mxu0 0.0
    %230 = vmatpush1.msra.mxu0 %v201
    %231 = vmatprep.subr.mxu0 0.0
    %232 = vmatpush1.msra.mxu0 %v202
    %233 = vmatprep.subr.mxu0 0.0
    %234 = vmatpush1.msra.mxu0 %v203
    %235 = vmatprep.subr.mxu0 0.0
    %236 = vmatpush1.msra.mxu0 %v204
    %237 = vmatprep.subr.mxu0 0.0
    %238 = vmatpush1.msra.mxu0 0.0
    %239 = vmatprep.subr.mxu0 0.0
    %240 = vmatpush1.msra.mxu0 0.0
    %241 = vmatprep.subr.mxu0 0.0
    %242 = vmatpush1.msra.mxu0 0.0
    %243 = vmatprep.subr.mxu0 0.0
    %244 = vmatpush1.msra.mxu0 0.0
    %245 = vmatprep.subr.mxu0 0.0
    %246 = vmatpush1.msra.mxu0 0.0
    %247 = vmatprep.subr.mxu0 0.0
    %248 = vmatpush1.msra.mxu0 0.0
    %249 = vmatprep.subr.mxu0 0.0
    %250 = vmatpush1.msra.mxu0 0.0
    %251 = vmatprep.subr.mxu0 0.0
    %252 = vmatpush1.msra.mxu0 0.0
    %253 = vmatprep.subr.mxu0 0.0
    %254 = vmatpush1.msra.mxu0 0.0
    %255 = vmatprep.subr.mxu0 0.0
    %256 = vmatpush1.msra.mxu0 0.0
    %257 = vmatprep.subr.mxu0 0.0
    %258 = vmatpush1.msra.mxu0 0.0
    %259 = vmatprep.subr.mxu0 0.0
    %260 = vmatpush1.msra.mxu0 0.0
    %261 = vmatprep.subr.mxu0 0.0
    %262 = vmatpush1.msra.mxu0 0.0
    %263 = vmatprep.subr.mxu0 0.0
    %264 = vmatpush1.msra.mxu0 0.0
    %265 = vmatprep.subr.mxu0 0.0
    %266 = vmatpush1.msra.mxu0 0.0
    %267 = vmatprep.subr.mxu0 0.0
    %268 = vmatpush1.msra.mxu0 0.0
    %269 = vmatprep.mubr.f32.mxu0 0.0
    %270 = vmatmul.mubr.f32.gmra.mrb[0].mxu0 %v187
    %v271 = vpop.f32.mrb[0].mxu0
    %v272 = vadd.f32 0.0, %v271
    %v273 = vpop.f32.mrb[0].mxu0
    %274 = vmatprep.mubr.f32.mxu0 0.0
    %275 = vmatmul.mubr.f32.gmra.mrb[0].mxu0 %v188
    %v276 = vpop.f32.mrb[0].mxu0
    %v277 = vadd.f32 0.0, %v276
    %v278 = vpop.f32.mrb[0].mxu0
    %279 = vdwg.mxu0
    %p280 = scmp.lt.s32.totalorder 0, 0
    // Predicated region
    $region38: #{tpu_custom_call.1} parent=1 // pred_check
      %p281 = pneg %p280
    $region39: #{tpu_custom_call.1} parent=1 // pred_check_branch
      %283 = sbr.rel (%p281) target = $region41
    $region40: #{tpu_custom_call.1} parent=1 // pred_region
      %v284 = vld [vmem:[#allocation2] sm:$0xff]
      %v285 = vld [vmem:[#allocation2 + $0x8] sm:$0xff]
      %v286 = vadd.f32 %v284, %v272
      %v287 = vadd.f32 %v285, %v277
      %288 = vst [vmem:[#allocation2] sm:$0xff] %v286
      %289 = vst [vmem:[#allocation2 + $0x8] sm:$0xff] %v287
    $region41: #{tpu_custom_call.1} parent=1 // pred_fallthru
      _
    // Predicated region
    $region42: #{tpu_custom_call.1} parent=1 // pred_check
      %p290 = pneg %p62
    $region43: #{tpu_custom_call.1} parent=1 // pred_check_branch
      %292 = sbr.rel (%p290) target = $region45
    $region44: #{tpu_custom_call.1} parent=1 // pred_region
      %v293 = vld [vmem:[#allocation2] sm:$0xff]
      %v294 = vld [vmem:[#allocation2 + $0x8] sm:$0xff]
      %v295 = vadd.f32 %v293, %v272
      %v296 = vadd.f32 %v294, %v277
      %297 = vst [vmem:[#allocation9] sm:$0xff] %v295
      %298 = vst [vmem:[#allocation9 + $0x8] sm:$0xff] %v296
    $region45: #{tpu_custom_call.1} parent=1 // pred_fallthru
      _
    // Predicated region
    $region46: #{tpu_custom_call.1} parent=1 // pred_check
      _
    $region47: #{tpu_custom_call.1} parent=1 // pred_check_branch
      %300 = sbr.rel (0) target = $region49
    $region48: #{tpu_custom_call.1} parent=1 // pred_region
      %s302 = ssub.s32 256, 256
      %303 = vsyncadd [#allocation5], %s302
      %s304 = sshll.u32 [#allocation9], 4
      %s305 = int_to_ptr.vmem [resolvable:$true] %s304
      %310 = dma.vmem_to_hbm [thread:$0]  %s305, 256, %s5, [#allocation5], 128, 128, 8
    $region49: #{tpu_custom_call.1} parent=1 // pred_fallthru
      _
    // Predicated region
    $region50: #{tpu_custom_call.1} parent=1 // pred_check
      _
    $region51: #{tpu_custom_call.1} parent=1 // pred_check_branch
      %312 = sbr.rel (0) target = $region53
    $region52: #{tpu_custom_call.1} parent=1 // pred_region
      %313 = dma.done [#allocation5], 256
    $region53: #{tpu_custom_call.1} parent=1 // pred_fallthru
      _
    %314 = vsyncpa [#allocation4], 1
    %315 = vsyncpa [#allocation7], 1
    %316 = vsyncpa [#allocation5], 1

</llo_original>
